<compile_context>
chip_gen: v6e
topology: v6e:2x2x1
jax: 0.10.0
libtpu: 0.0.40
codegen_flags: <defaults>
</compile_context>

<pallas_src>
import functools

import jax
import jax.numpy as jnp
from jax.experimental import pallas as pl
from jax.experimental.pallas import tpu as pltpu


def _round_up(x, m):
    return ((x + m - 1) // m) * m


# ----------------------------------------------------------------------------
# Single-step kernel (== FCModel.forward)
# ----------------------------------------------------------------------------
def _fc_cell_kernel(x_ref, h_ref, c_ref, wi_ref, wh_ref, b_ref,
                    h_out_ref, c_out_ref, *, hp):
    # Two MXU matmuls (no in-kernel lane concat); bf16 operands, f32 accumulate.
    sums = (
        jnp.dot(x_ref[...], wi_ref[...], preferred_element_type=jnp.float32)
        + jnp.dot(h_ref[...], wh_ref[...], preferred_element_type=jnp.float32)
        + b_ref[...]
    )  # (bb, 5*Hp) f32

    c = c_ref[...]  # f32, gate-padded to Hp lanes

    # Every gate slice is a whole 128-lane-aligned slab -> no XLU rotates.
    sigmoid_chunk = jax.nn.sigmoid(sums[:, : 3 * hp])
    in_gate = sigmoid_chunk[:, 0 * hp:1 * hp]
    forget_gate = sigmoid_chunk[:, 1 * hp:2 * hp]
    out_gate = sigmoid_chunk[:, 2 * hp:3 * hp]
    in_transform = jnp.maximum(sums[:, 3 * hp:4 * hp], sums[:, 4 * hp:5 * hp])

    next_c = forget_gate * c + in_gate * in_transform
    next_h = out_gate * jnp.tanh(next_c)

    # Lane-dense (bb, Hp) unmasked stores.
    h_out_ref[...] = next_h.astype(h_out_ref.dtype)
    c_out_ref[...] = next_c.astype(c_out_ref.dtype)


@functools.partial(jax.jit, static_argnames=("hidden_size",))
def fc_model_forward(xt, state, params, *, hidden_size):
    """Pallas equivalent of FCModel.forward (one cell step).

    xt:    (B, input_size) f32
    state: (h, c), each (B, hidden_size) f32
    params: dict with gate-column-padded weights (see init_params)
    Returns (next_h, next_c), each (B, hidden_size).
    """
    h, c = state
    B, Kx = xt.shape
    H = hidden_size
    Hp = _round_up(H, 128)
    N = 5 * Hp
    dtype = xt.dtype

    # bf16 activations for the MXU; pad h/c to the lane-aligned width Hp.
    x_bf = xt.astype(jnp.bfloat16)
    h_p = jnp.pad(h, ((0, 0), (0, Hp - H))).astype(jnp.bfloat16)
    c_p = jnp.pad(c, ((0, 0), (0, Hp - H))).astype(jnp.float32)

    # Batch grid (splits across TensorCores on v7x when B is large enough).
    if B % 256 == 0:
        bb = 256
    elif B % 128 == 0:
        bb = 128
    else:
        bb = B

    kernel = functools.partial(_fc_cell_kernel, hp=Hp)

    bytes_accessed = (x_bf.size * 2 + h_p.size * 2 + c_p.size * 4
                      + params["wi"].size * 2 + params["wh"].size * 2
                      + params["b"].size * 4
                      + 2 * B * Hp * jnp.dtype(dtype).itemsize)
    cost = pl.CostEstimate(
        flops=2 * B * (Kx + Hp) * N,
        transcendentals=4 * B * Hp,  # 3*Hp sigmoid + Hp tanh per row
        bytes_accessed=int(bytes_accessed),
    )

    h_out, c_out = pl.pallas_call(
        kernel,
        out_shape=(jax.ShapeDtypeStruct((B, Hp), dtype),
                   jax.ShapeDtypeStruct((B, Hp), dtype)),
        grid=(B // bb,),
        in_specs=[
            pl.BlockSpec((bb, Kx), lambda i: (i, 0)),   # x
            pl.BlockSpec((bb, Hp), lambda i: (i, 0)),   # h (padded)
            pl.BlockSpec((bb, Hp), lambda i: (i, 0)),   # c (padded)
            pl.BlockSpec((Kx, N), lambda i: (0, 0)),    # Wi (resident)
            pl.BlockSpec((Hp, N), lambda i: (0, 0)),    # Wh (resident)
            pl.BlockSpec((1, N), lambda i: (0, 0)),     # fused bias (resident)
        ],
        out_specs=(pl.BlockSpec((bb, Hp), lambda i: (i, 0)),
                   pl.BlockSpec((bb, Hp), lambda i: (i, 0))),
        compiler_params=pltpu.CompilerParams(
            dimension_semantics=("parallel",)),
        cost_estimate=cost,
    )(x_bf, h_p, c_p, params["wi"], params["wh"], params["b"])

    return h_out[:, :H], c_out[:, :H]


# ----------------------------------------------------------------------------
# Sequence kernel: time loop fused into one pallas_call (review item #2/#3)
# ----------------------------------------------------------------------------
def _fc_seq_kernel(xproj_ref, wh_ref, h0_ref, c0_ref,
                   hs_ref, c_last_ref, h_sc, c_sc, *, hp):
    t = pl.program_id(0)

    @pl.when(t == 0)
    def _():
        h_sc[...] = h0_ref[...]
        c_sc[...] = c0_ref[...]

    # Only the recurrent half is done per step; x_t @ Wi (+ bias) was batched
    # over all T as one big GEMM outside the loop and streamed in via BlockSpec.
    sums = xproj_ref[0] + jnp.dot(
        h_sc[...].astype(wh_ref.dtype), wh_ref[...],
        preferred_element_type=jnp.float32)  # (B, 5*Hp) f32

    sigmoid_chunk = jax.nn.sigmoid(sums[:, : 3 * hp])
    in_gate = sigmoid_chunk[:, 0 * hp:1 * hp]
    forget_gate = sigmoid_chunk[:, 1 * hp:2 * hp]
    out_gate = sigmoid_chunk[:, 2 * hp:3 * hp]
    in_transform = jnp.maximum(sums[:, 3 * hp:4 * hp], sums[:, 4 * hp:5 * hp])

    next_c = forget_gate * c_sc[...] + in_gate * in_transform
    next_h = out_gate * jnp.tanh(next_c)

    h_sc[...] = next_h
    c_sc[...] = next_c

    hs_ref[0] = next_h.astype(hs_ref.dtype)
    c_last_ref[...] = next_c.astype(c_last_ref.dtype)


@functools.partial(jax.jit, static_argnames=("hidden_size",))
def fc_model_sequence(xs, state, params, *, hidden_size):
    """Run the FCModel cell over a (T, B, input_size) sequence in ONE pallas_call.

    grid=(T,) "arbitrary"; Wh stays VMEM-resident; h/c carried in VMEM scratch;
    x_t projection precomputed for all T as a single large GEMM.
    Returns (all_h (T,B,H), (h_T, c_T)).
    """
    h0, c0 = state
    T, B, Kx = xs.shape
    H = hidden_size
    Hp = _round_up(H, 128)
    N = 5 * Hp

    # Time-batched input projection + fused bias (M = T*B rows for the MXU).
    xproj = (jnp.dot(xs.reshape(T * B, Kx).astype(params["wi"].dtype),
                     params["wi"], preferred_element_type=jnp.float32)
             + params["b"]).reshape(T, B, N)

    h0_p = jnp.pad(h0, ((0, 0), (0, Hp - H))).astype(jnp.float32)
    c0_p = jnp.pad(c0, ((0, 0), (0, Hp - H))).astype(jnp.float32)

    kernel = functools.partial(_fc_seq_kernel, hp=Hp)

    hs, c_last = pl.pallas_call(
        kernel,
        out_shape=(jax.ShapeDtypeStruct((T, B, Hp), xs.dtype),
                   jax.ShapeDtypeStruct((B, Hp), xs.dtype)),
        grid=(T,),
        in_specs=[
            pl.BlockSpec((1, B, N), lambda t: (t, 0, 0)),  # x_t projection
            pl.BlockSpec((Hp, N), lambda t: (0, 0)),       # Wh (resident)
            pl.BlockSpec((B, Hp), lambda t: (0, 0)),       # h0
            pl.BlockSpec((B, Hp), lambda t: (0, 0)),       # c0
        ],
        out_specs=(pl.BlockSpec((1, B, Hp), lambda t: (t, 0, 0)),
                   pl.BlockSpec((B, Hp), lambda t: (0, 0))),
        scratch_shapes=[pltpu.VMEM((B, Hp), jnp.float32),   # h carry
                        pltpu.VMEM((B, Hp), jnp.float32)],  # c carry
        compiler_params=pltpu.CompilerParams(
            dimension_semantics=("arbitrary",)),
    )(xproj, params["wh"], h0_p, c0_p)

    return hs[:, :, :H], (hs[-1, :, :H], c_last[:, :H])


# ----------------------------------------------------------------------------
# Parameters
# ----------------------------------------------------------------------------
def init_params(key, input_size, hidden_size, weight_dtype=jnp.bfloat16):
    """Init mirroring nn.Linear(in, 5H) for i2h and h2h.

    Kernel params are stored pre-transposed (in, out), with each of the 5 gate
    column blocks padded to Hp = round_up(H, 128) lanes (zeros), Wh rows padded
    H -> Hp (zeros), and the two biases pre-summed. f32 originals are returned
    separately for the reference check.
    """
    H = hidden_size
    Hp = _round_up(H, 128)
    k1, k2, k3, k4 = jax.random.split(key, 4)
    out = 5 * H
    si = 1.0 / (input_size ** 0.5)
    sh = 1.0 / (hidden_size ** 0.5)
    wi = jax.random.uniform(k1, (input_size, out), jnp.float32, -si, si)
    bi = jax.random.uniform(k2, (out,), jnp.float32, -si, si)
    wh = jax.random.uniform(k3, (hidden_size, out), jnp.float32, -sh, sh)
    bh = jax.random.uniform(k4, (out,), jnp.float32, -sh, sh)

    def pad_gate_cols(m):  # (..., 5*H) -> (..., 5*Hp), each gate padded to Hp
        lead = m.shape[:-1]
        m5 = m.reshape(lead + (5, H))
        m5 = jnp.pad(m5, [(0, 0)] * len(lead) + [(0, 0), (0, Hp - H)])
        return m5.reshape(lead + (5 * Hp,))

    wi_p = pad_gate_cols(wi).astype(weight_dtype)                       # (Kx, 5*Hp)
    wh_p = jnp.pad(pad_gate_cols(wh), ((0, Hp - H), (0, 0))).astype(weight_dtype)  # (Hp, 5*Hp)
    b_p = pad_gate_cols((bi + bh)[None, :]).astype(jnp.float32)         # (1, 5*Hp)

    params = {"wi": wi_p, "wh": wh_p, "b": b_p}
    ref_params = {"wi": wi, "bi": bi, "wh": wh, "bh": bh}
    return params, ref_params


# ----------------------------------------------------------------------------
# Plain-JAX f32 reference (exactly the original PyTorch math, unfused weights)
# ----------------------------------------------------------------------------
def _reference_forward(xt, state, p, hidden_size):
    H = hidden_size
    h, c = state
    sums = xt @ p["wi"] + p["bi"] + h @ p["wh"] + p["bh"]
    sig = jax.nn.sigmoid(sums[:, : 3 * H])
    in_g, f_g, o_g = sig[:, :H], sig[:, H:2 * H], sig[:, 2 * H:3 * H]
    tr = jnp.maximum(sums[:, 3 * H:4 * H], sums[:, 4 * H:])
    next_c = f_g * c + in_g * tr
    next_h = o_g * jnp.tanh(next_c)
    return next_h, next_c


def _reference_sequence(xs, state, p, hidden_size):
    def step(carry, x):
        h, c = _reference_forward(x, carry, p, hidden_size)
        return (h, c), h
    (hT, cT), hs = jax.lax.scan(step, state, xs)
    return hs, (hT, cT)


if __name__ == "__main__":
    # Small shapes consistent with the module: batch=8, input=32, hidden=32, T=8.
    B, input_size, hidden_size, T = 8, 32, 32, 8
    key = jax.random.PRNGKey(0)
    kx, kh, kc, kp, ks = jax.random.split(key, 5)

    xt = jax.random.normal(kx, (B, input_size), jnp.float32)
    h0 = jax.random.normal(kh, (B, hidden_size), jnp.float32)
    c0 = jax.random.normal(kc, (B, hidden_size), jnp.float32)
    xs = jax.random.normal(ks, (T, B, input_size), jnp.float32)
    params, ref_params = init_params(kp, input_size, hidden_size)

    # NOTE: self.dropout is defined in __init__ but never used in forward -> omitted.
    # Single cell step (== FCModel.forward).
    next_h, next_c = fc_model_forward(xt, (h0, c0), params, hidden_size=hidden_size)
    jax.block_until_ready((next_h, next_c))

    ref_h, ref_c = _reference_forward(xt, (h0, c0), ref_params, hidden_size)
    assert next_h.shape == (B, hidden_size) and next_c.shape == (B, hidden_size)
    assert jnp.allclose(next_h, ref_h, atol=3e-2, rtol=3e-2), \
        float(jnp.max(jnp.abs(next_h - ref_h)))
    assert jnp.allclose(next_c, ref_c, atol=3e-2, rtol=3e-2), \
        float(jnp.max(jnp.abs(next_c - ref_c)))

    # Sequence variant: time loop fused into one pallas_call (per review).
    hs, (hT, cT) = fc_model_sequence(xs, (h0, c0), params, hidden_size=hidden_size)
    jax.block_until_ready((hs, hT, cT))

    ref_hs, (ref_hT, ref_cT) = _reference_sequence(xs, (h0, c0), ref_params, hidden_size)
    assert jnp.allclose(hs, ref_hs, atol=5e-2, rtol=5e-2), \
        float(jnp.max(jnp.abs(hs - ref_hs)))
    assert jnp.allclose(cT, ref_cT, atol=5e-2, rtol=5e-2), \
        float(jnp.max(jnp.abs(cT - ref_cT)))

    print("KERNEL_OK")
</pallas_src>

<mosaic_0001>
module attributes {stable_mosaic.version = 11 : i64} {
  func.func @_fc_cell_kernel(%arg0: i32, %arg1: memref<8x32xbf16, #tpu.memory_space<vmem>>, %arg2: memref<8x128xbf16, #tpu.memory_space<vmem>>, %arg3: memref<8x128xf32, #tpu.memory_space<vmem>>, %arg4: memref<32x640xbf16, #tpu.memory_space<vmem>>, %arg5: memref<128x640xbf16, #tpu.memory_space<vmem>>, %arg6: memref<1x640xf32, #tpu.memory_space<vmem>>, %arg7: memref<8x128xf32, #tpu.memory_space<vmem>>, %arg8: memref<8x128xf32, #tpu.memory_space<vmem>>) attributes {dimension_semantics = [#tpu.dimension_semantics<parallel>], iteration_bounds = array<i64: 1>, scalar_prefetch = 0 : i64, scratch_operands = 0 : i64, tpu.core_type = #tpu.core_type<tc>, window_params = [{transform_indices = @transform_0, window_bounds = array<i64: 8, 32>}, {transform_indices = @transform_1, window_bounds = array<i64: 8, 128>}, {transform_indices = @transform_2, window_bounds = array<i64: 8, 128>}, {pipeline_mode = #tpu.pipeline_mode<synchronous>, transform_indices = @transform_3, window_bounds = array<i64: 32, 640>}, {pipeline_mode = #tpu.pipeline_mode<synchronous>, transform_indices = @transform_4, window_bounds = array<i64: 128, 640>}, {pipeline_mode = #tpu.pipeline_mode<synchronous>, transform_indices = @transform_5, window_bounds = array<i64: 1, 640>}, {transform_indices = @transform_6, window_bounds = array<i64: 8, 128>}, {transform_indices = @transform_7, window_bounds = array<i64: 8, 128>}]} {
    %c0 = arith.constant 0 : index
    %c0_0 = arith.constant 0 : index
    %0 = vector.load %arg1[%c0, %c0_0] : memref<8x32xbf16, #tpu.memory_space<vmem>>, vector<8x32xbf16>
    %c0_1 = arith.constant 0 : index
    %c0_2 = arith.constant 0 : index
    %1 = vector.load %arg4[%c0_1, %c0_2] : memref<32x640xbf16, #tpu.memory_space<vmem>>, vector<32x640xbf16>
    %cst = arith.constant dense<0.000000e+00> : vector<8x640xf32>
    %2 = tpu.matmul %0, %1, %cst {dimension_numbers = #tpu.dot_dimension_numbers<[1], [0], [0], [1], [0, 0, 1, 1], [], []>} : vector<8x32xbf16>, vector<32x640xbf16>, vector<8x640xf32> -> vector<8x640xf32>
    %c0_3 = arith.constant 0 : index
    %c0_4 = arith.constant 0 : index
    %3 = vector.load %arg2[%c0_3, %c0_4] : memref<8x128xbf16, #tpu.memory_space<vmem>>, vector<8x128xbf16>
    %c0_5 = arith.constant 0 : index
    %c0_6 = arith.constant 0 : index
    %4 = vector.load %arg5[%c0_5, %c0_6] : memref<128x640xbf16, #tpu.memory_space<vmem>>, vector<128x640xbf16>
    %cst_7 = arith.constant dense<0.000000e+00> : vector<8x640xf32>
    %5 = tpu.matmul %3, %4, %cst_7 {dimension_numbers = #tpu.dot_dimension_numbers<[1], [0], [0], [1], [0, 0, 1, 1], [], []>} : vector<8x128xbf16>, vector<128x640xbf16>, vector<8x640xf32> -> vector<8x640xf32>
    %6 = arith.addf %2, %5 : vector<8x640xf32>
    %c0_8 = arith.constant 0 : index
    %c0_9 = arith.constant 0 : index
    %7 = vector.load %arg6[%c0_8, %c0_9] : memref<1x640xf32, #tpu.memory_space<vmem>>, vector<1x640xf32>
    %8 = vector.broadcast %7 : vector<1x640xf32> to vector<8x640xf32>
    %9 = arith.addf %6, %8 : vector<8x640xf32>
    %c0_10 = arith.constant 0 : index
    %c0_11 = arith.constant 0 : index
    %10 = vector.load %arg3[%c0_10, %c0_11] : memref<8x128xf32, #tpu.memory_space<vmem>>, vector<8x128xf32>
    %11 = vector.extract_strided_slice %9 {offsets = [0, 0], sizes = [8, 384], strides = [1, 1]} : vector<8x640xf32> to vector<8x384xf32>
    %12 = arith.negf %11 : vector<8x384xf32>
    %13 = math.exp %12 : vector<8x384xf32>
    %cst_12 = arith.constant 1.000000e+00 : f32
    %14 = vector.broadcast %cst_12 : f32 to vector<8x384xf32>
    %15 = arith.addf %14, %13 : vector<8x384xf32>
    %16 = arith.divf %14, %15 : vector<8x384xf32>
    %17 = vector.extract_strided_slice %16 {offsets = [0, 0], sizes = [8, 128], strides = [1, 1]} : vector<8x384xf32> to vector<8x128xf32>
    %18 = vector.extract_strided_slice %16 {offsets = [0, 128], sizes = [8, 128], strides = [1, 1]} : vector<8x384xf32> to vector<8x128xf32>
    %19 = vector.extract_strided_slice %16 {offsets = [0, 256], sizes = [8, 128], strides = [1, 1]} : vector<8x384xf32> to vector<8x128xf32>
    %20 = vector.extract_strided_slice %9 {offsets = [0, 384], sizes = [8, 128], strides = [1, 1]} : vector<8x640xf32> to vector<8x128xf32>
    %21 = vector.extract_strided_slice %9 {offsets = [0, 512], sizes = [8, 128], strides = [1, 1]} : vector<8x640xf32> to vector<8x128xf32>
    %22 = arith.maximumf %20, %21 : vector<8x128xf32>
    %23 = arith.mulf %18, %10 : vector<8x128xf32>
    %24 = arith.mulf %17, %22 : vector<8x128xf32>
    %25 = arith.addf %23, %24 : vector<8x128xf32>
    %26 = math.tanh %25 : vector<8x128xf32>
    %27 = arith.mulf %19, %26 : vector<8x128xf32>
    %c0_13 = arith.constant 0 : index
    %c0_14 = arith.constant 0 : index
    %28 = vector.load %arg7[%c0_13, %c0_14] : memref<8x128xf32, #tpu.memory_space<vmem>>, vector<8x128xf32>
    tpu.vector_store %arg7[%c0_13, %c0_14], %27 {strides = array<i32>} : memref<8x128xf32, #tpu.memory_space<vmem>>, vector<8x128xf32>,
    %c0_15 = arith.constant 0 : index
    %c0_16 = arith.constant 0 : index
    %29 = vector.load %arg8[%c0_15, %c0_16] : memref<8x128xf32, #tpu.memory_space<vmem>>, vector<8x128xf32>
    tpu.vector_store %arg8[%c0_15, %c0_16], %25 {strides = array<i32>} : memref<8x128xf32, #tpu.memory_space<vmem>>, vector<8x128xf32>,
    return
  }
  func.func @transform_0(%arg0: i32) -> (i32, i32) {
    %c0_i32 = arith.constant 0 : i32
    %c0_i32_0 = arith.constant 0 : i32
    return %arg0, %c0_i32 : i32, i32
  }
  func.func @transform_1(%arg0: i32) -> (i32, i32) {
    %c0_i32 = arith.constant 0 : i32
    %c0_i32_0 = arith.constant 0 : i32
    return %arg0, %c0_i32 : i32, i32
  }
  func.func @transform_2(%arg0: i32) -> (i32, i32) {
    %c0_i32 = arith.constant 0 : i32
    %c0_i32_0 = arith.constant 0 : i32
    return %arg0, %c0_i32 : i32, i32
  }
  func.func @transform_3(%arg0: i32) -> (i32, i32) {
    %c0_i32 = arith.constant 0 : i32
    %c0_i32_0 = arith.constant 0 : i32
    %c0_i32_1 = arith.constant 0 : i32
    return %c0_i32, %c0_i32_0 : i32, i32
  }
  func.func @transform_4(%arg0: i32) -> (i32, i32) {
    %c0_i32 = arith.constant 0 : i32
    %c0_i32_0 = arith.constant 0 : i32
    %c0_i32_1 = arith.constant 0 : i32
    return %c0_i32, %c0_i32_0 : i32, i32
  }
  func.func @transform_5(%arg0: i32) -> (i32, i32) {
    %c0_i32 = arith.constant 0 : i32
    %c0_i32_0 = arith.constant 0 : i32
    %c0_i32_1 = arith.constant 0 : i32
    return %c0_i32, %c0_i32_0 : i32, i32
  }
  func.func @transform_6(%arg0: i32) -> (i32, i32) {
    %c0_i32 = arith.constant 0 : i32
    %c0_i32_0 = arith.constant 0 : i32
    return %arg0, %c0_i32 : i32, i32
  }
  func.func @transform_7(%arg0: i32) -> (i32, i32) {
    %c0_i32 = arith.constant 0 : i32
    %c0_i32_0 = arith.constant 0 : i32
    return %arg0, %c0_i32 : i32, i32
  }
}

</mosaic_0001>

<llo_original>
// kernel: fc_model_forward.1
$region0: #{fc_model_forward.1}
  #allocation0 [shape = 'u32[]', space=smem, size = 0x4, offset = 0x4, fixed_abs, tag = 'smem constant byte address 0x4 - core index']
  #allocation1 [shape = 'u32[144,128]{1,0:T(1,128)}', space=vmem, size = 0x12000, scoped, tag = 'internal scratch']
  %s0 = inlined_call_operand.vmem [shape: bf16[8,32], index: 0, kind: input, shape index: {}]
  %s1 = inlined_call_operand.vmem [shape: bf16[8,128], index: 1, kind: input, shape index: {}]
  %s2 = inlined_call_operand.vmem [shape: f32[8,128], index: 2, kind: input, shape index: {}]
  %s3 = inlined_call_operand.hbm [shape: bf16[32,640], index: 3, kind: input, shape index: {}]
  %s4 = inlined_call_operand.hbm [shape: bf16[128,640], index: 4, kind: input, shape index: {}]
  %s5 = inlined_call_operand.vmem [shape: f32[1,640], index: 5, kind: input, shape index: {}]
  %s6 = inlined_call_operand.hbm [shape: f32[8,128], index: 6, kind: output, shape index: {0}]
  %s7 = inlined_call_operand.hbm [shape: f32[8,128], index: 7, kind: output, shape index: {1}]
  %8 = xla_tuple %s6, %s7
  %s9 = sld [smem:[#allocation0]]
  $region50: #{fc_model_forward.1} parent=0
    _
  %s11 = ssub.s32 1, %s9
  %s12 = scalar_select 0, %s11, %s9
  $region1: #{fc_model_forward.1} parent=0
    #allocation2 [shape = 'u8[40960]{0}', space=vmem, size = 0xa000, scoped, tag = 'input window, operand 3, single buffered']
    #allocation3 [shape = 's32[1]{0}', space=sflag, size = 0x4, scoped, tag = 'scoped memory for fc_model_forward.1']
    #allocation4 [shape = 's32[1]{0}', space=sflag, size = 0x4, scoped, tag = 'scoped memory for fc_model_forward.1']
    #allocation5 [shape = 'u8[163840]{0}', space=vmem, size = 0x28000, scoped, tag = 'input window, operand 4, single buffered']
    #allocation6 [shape = 's32[1]{0}', space=sflag, size = 0x4, scoped, tag = 'scoped memory for fc_model_forward.1']
    #allocation7 [shape = 'u8[4096]{0}', space=vmem, size = 0x1000, scoped, tag = 'output window, operand 0, single buffered']
    #allocation8 [shape = 'u8[4096]{0}', space=vmem, size = 0x1000, scoped, tag = 'output window, operand 1, single buffered']
    #allocation9 [shape = 's32[1]{0}', space=sflag, size = 0x4, scoped, tag = 'scoped memory for fc_model_forward.1']
    %13 = vsyncpa [#allocation3], 0
    %14 = vsyncpa [#allocation6], 0
    %15 = vsyncpa [#allocation4], 0
    %16 = vsyncpa [#allocation9], 0
    // Predicated region
    $region2: #{fc_model_forward.1} parent=1 // pred_check
      _
    $region3: #{fc_model_forward.1} parent=1 // pred_check_branch
      %18 = sbr.rel (0) target = $region5
    $region4: #{fc_model_forward.1} parent=1 // pred_region
      _
    $region5: #{fc_model_forward.1} parent=1 // pred_fallthru
      _
    // Predicated region
    $region6: #{fc_model_forward.1} parent=1 // pred_check
      _
    $region7: #{fc_model_forward.1} parent=1 // pred_check_branch
      %20 = sbr.rel (0) target = $region9
    $region8: #{fc_model_forward.1} parent=1 // pred_region
      _
    $region9: #{fc_model_forward.1} parent=1 // pred_fallthru
      _
    // Predicated region
    $region10: #{fc_model_forward.1} parent=1 // pred_check
      _
    $region11: #{fc_model_forward.1} parent=1 // pred_check_branch
      %22 = sbr.rel (0) target = $region13
    $region12: #{fc_model_forward.1} parent=1 // pred_region
      _
    $region13: #{fc_model_forward.1} parent=1 // pred_fallthru
      _
    // Predicated region
    $region14: #{fc_model_forward.1} parent=1 // pred_check
      _
    $region15: #{fc_model_forward.1} parent=1 // pred_check_branch
      %24 = sbr.rel (0) target = $region17
    $region16: #{fc_model_forward.1} parent=1 // pred_region
      %s26 = ssub.s32 1280, 1280
      %27 = vsyncadd [#allocation3], %s26
      %s28 = sshll.u32 [#allocation2], 4
      %s29 = int_to_ptr.vmem [resolvable:$true] %s28
      %34 = dma.hbm_to_vmem [thread:$0]  %s3, 1280, %s29, [#allocation3], 320, 320, 20
    $region17: #{fc_model_forward.1} parent=1 // pred_fallthru
      _
    // Predicated region
    $region18: #{fc_model_forward.1} parent=1 // pred_check
      _
    $region19: #{fc_model_forward.1} parent=1 // pred_check_branch
      %36 = sbr.rel (0) target = $region21
    $region20: #{fc_model_forward.1} parent=1 // pred_region
      %s38 = ssub.s32 5120, 5120
      %39 = vsyncadd [#allocation6], %s38
      %s40 = sshll.u32 [#allocation5], 4
      %s41 = int_to_ptr.vmem [resolvable:$true] %s40
      %46 = dma.hbm_to_vmem [thread:$0]  %s4, 5120, %s41, [#allocation6], 320, 320, 20
    $region21: #{fc_model_forward.1} parent=1 // pred_fallthru
      _
    // Predicated region
    $region22: #{fc_model_forward.1} parent=1 // pred_check
      _
    $region23: #{fc_model_forward.1} parent=1 // pred_check_branch
      %48 = sbr.rel (0) target = $region25
    $region24: #{fc_model_forward.1} parent=1 // pred_region
      _
    $region25: #{fc_model_forward.1} parent=1 // pred_fallthru
      _
    // Predicated region
    $region26: #{fc_model_forward.1} parent=1 // pred_check
      _
    $region27: #{fc_model_forward.1} parent=1 // pred_check_branch
      %50 = sbr.rel (0) target = $region29
    $region28: #{fc_model_forward.1} parent=1 // pred_region
      %51 = dma.done [#allocation3], 1280
    $region29: #{fc_model_forward.1} parent=1 // pred_fallthru
      _
    // Predicated region
    $region30: #{fc_model_forward.1} parent=1 // pred_check
      _
    $region31: #{fc_model_forward.1} parent=1 // pred_check_branch
      %53 = sbr.rel (0) target = $region33
    $region32: #{fc_model_forward.1} parent=1 // pred_region
      %54 = dma.done [#allocation6], 5120
    $region33: #{fc_model_forward.1} parent=1 // pred_fallthru
      _
    %v56 = vld [vmem:[%s0] sm:$0xf]
    %v57 = vld [vmem:[#allocation2] sm:$0xff]
    %v58 = vld [vmem:[#allocation2 + $0x8] sm:$0xff]
    %v59 = vld [vmem:[#allocation2 + $0x10] sm:$0xf]
    %v60 = vld [vmem:[#allocation2 + $0x14] sm:$0xff]
    %v61 = vld [vmem:[#allocation2 + $0x1c] sm:$0xff]
    %v62 = vld [vmem:[#allocation2 + $0x24] sm:$0xf]
    %v63 = vld [vmem:[#allocation2 + $0x28] sm:$0xff]
    %v64 = vld [vmem:[#allocation2 + $0x30] sm:$0xff]
    %v65 = vld [vmem:[#allocation2 + $0x38] sm:$0xf]
    %v66 = vld [vmem:[#allocation2 + $0x3c] sm:$0xff]
    %v67 = vld [vmem:[#allocation2 + $0x44] sm:$0xff]
    %v68 = vld [vmem:[#allocation2 + $0x4c] sm:$0xf]
    %v69 = vld [vmem:[%s1] sm:$0xf]
    %v70 = vld [vmem:[#allocation5] sm:$0xff]
    %v71 = vld [vmem:[#allocation5 + $0x8] sm:$0xff]
    %v72 = vld [vmem:[#allocation5 + $0x10] sm:$0xf]
    %v73 = vld [vmem:[#allocation5 + $0x14] sm:$0xff]
    %v74 = vld [vmem:[#allocation5 + $0x1c] sm:$0xff]
    %v75 = vld [vmem:[#allocation5 + $0x24] sm:$0xf]
    %v76 = vld [vmem:[#allocation5 + $0x28] sm:$0xff]
    %v77 = vld [vmem:[#allocation5 + $0x30] sm:$0xff]
    %v78 = vld [vmem:[#allocation5 + $0x38] sm:$0xf]
    %v79 = vld [vmem:[#allocation5 + $0x3c] sm:$0xff]
    %v80 = vld [vmem:[#allocation5 + $0x44] sm:$0xff]
    %v81 = vld [vmem:[#allocation5 + $0x4c] sm:$0xf]
    %v82 = vld [vmem:[#allocation5 + $0x50] sm:$0xff]
    %v83 = vld [vmem:[#allocation5 + $0x58] sm:$0xff]
    %v84 = vld [vmem:[#allocation5 + $0x60] sm:$0xf]
    %v85 = vld [vmem:[#allocation5 + $0x64] sm:$0xff]
    %v86 = vld [vmem:[#allocation5 + $0x6c] sm:$0xff]
    %v87 = vld [vmem:[#allocation5 + $0x74] sm:$0xf]
    %v88 = vld [vmem:[#allocation5 + $0x78] sm:$0xff]
    %v89 = vld [vmem:[#allocation5 + $0x80] sm:$0xff]
    %v90 = vld [vmem:[#allocation5 + $0x88] sm:$0xf]
    %v91 = vld [vmem:[#allocation5 + $0x8c] sm:$0xff]
    %v92 = vld [vmem:[#allocation5 + $0x94] sm:$0xff]
    %v93 = vld [vmem:[#allocation5 + $0x9c] sm:$0xf]
    %v94 = vld [vmem:[#allocation5 + $0xa0] sm:$0xff]
    %v95 = vld [vmem:[#allocation5 + $0xa8] sm:$0xff]
    %v96 = vld [vmem:[#allocation5 + $0xb0] sm:$0xf]
    %v97 = vld [vmem:[#allocation5 + $0xb4] sm:$0xff]
    %v98 = vld [vmem:[#allocation5 + $0xbc] sm:$0xff]
    %v99 = vld [vmem:[#allocation5 + $0xc4] sm:$0xf]
    %v100 = vld [vmem:[#allocation5 + $0xc8] sm:$0xff]
    %v101 = vld [vmem:[#allocation5 + $0xd0] sm:$0xff]
    %v102 = vld [vmem:[#allocation5 + $0xd8] sm:$0xf]
    %v103 = vld [vmem:[#allocation5 + $0xdc] sm:$0xff]
    %v104 = vld [vmem:[#allocation5 + $0xe4] sm:$0xff]
    %v105 = vld [vmem:[#allocation5 + $0xec] sm:$0xf]
    %v106 = vld [vmem:[#allocation5 + $0xf0] sm:$0xff]
    %v107 = vld [vmem:[#allocation5 + $0xf8] sm:$0xff]
    %v108 = vld [vmem:[#allocation5 + $0x100] sm:$0xf]
    %v109 = vld [vmem:[#allocation5 + $0x104] sm:$0xff]
    %v110 = vld [vmem:[#allocation5 + $0x10c] sm:$0xff]
    %v111 = vld [vmem:[#allocation5 + $0x114] sm:$0xf]
    %v112 = vld [vmem:[#allocation5 + $0x118] sm:$0xff]
    %v113 = vld [vmem:[#allocation5 + $0x120] sm:$0xff]
    %v114 = vld [vmem:[#allocation5 + $0x128] sm:$0xf]
    %v115 = vld [vmem:[#allocation5 + $0x12c] sm:$0xff]
    %v116 = vld [vmem:[#allocation5 + $0x134] sm:$0xff]
    %v117 = vld [vmem:[#allocation5 + $0x13c] sm:$0xf]
    %v166 = vunpack.c.l.b16 %v70
    %v167 = vunpack.c.h.b16 %v70
    %v168 = vunpack.c.l.b16 %v71
    %v169 = vunpack.c.h.b16 %v71
    %v170 = vunpack.c.l.b16 %v72
    %v171 = vunpack.c.l.b16 %v73
    %v172 = vunpack.c.h.b16 %v73
    %v173 = vunpack.c.l.b16 %v74
    %v174 = vunpack.c.h.b16 %v74
    %v175 = vunpack.c.l.b16 %v75
    %v176 = vunpack.c.l.b16 %v76
    %v177 = vunpack.c.h.b16 %v76
    %v178 = vunpack.c.l.b16 %v77
    %v179 = vunpack.c.h.b16 %v77
    %v180 = vunpack.c.l.b16 %v78
    %v181 = vunpack.c.l.b16 %v79
    %v182 = vunpack.c.h.b16 %v79
    %v183 = vunpack.c.l.b16 %v80
    %v184 = vunpack.c.h.b16 %v80
    %v185 = vunpack.c.l.b16 %v81
    %v186 = vunpack.c.l.b16 %v82
    %v187 = vunpack.c.h.b16 %v82
    %v188 = vunpack.c.l.b16 %v83
    %v189 = vunpack.c.h.b16 %v83
    %v190 = vunpack.c.l.b16 %v84
    %v191 = vunpack.c.l.b16 %v85
    %v192 = vunpack.c.h.b16 %v85
    %v193 = vunpack.c.l.b16 %v86
    %v194 = vunpack.c.h.b16 %v86
    %v195 = vunpack.c.l.b16 %v87
    %v196 = vunpack.c.l.b16 %v88
    %v197 = vunpack.c.h.b16 %v88
    %v198 = vunpack.c.l.b16 %v89
    %v199 = vunpack.c.h.b16 %v89
    %v200 = vunpack.c.l.b16 %v90
    %v201 = vunpack.c.l.b16 %v91
    %v202 = vunpack.c.h.b16 %v91
    %v203 = vunpack.c.l.b16 %v92
    %v204 = vunpack.c.h.b16 %v92
    %v205 = vunpack.c.l.b16 %v93
    %v206 = vunpack.c.l.b16 %v94
    %v207 = vunpack.c.h.b16 %v94
    %v208 = vunpack.c.l.b16 %v95
    %v209 = vunpack.c.h.b16 %v95
    %v210 = vunpack.c.l.b16 %v96
    %v211 = vunpack.c.l.b16 %v97
    %v212 = vunpack.c.h.b16 %v97
    %v213 = vunpack.c.l.b16 %v98
    %v214 = vunpack.c.h.b16 %v98
    %v215 = vunpack.c.l.b16 %v99
    %v216 = vunpack.c.l.b16 %v100
    %v217 = vunpack.c.h.b16 %v100
    %v218 = vunpack.c.l.b16 %v101
    %v219 = vunpack.c.h.b16 %v101
    %v220 = vunpack.c.l.b16 %v102
    %v221 = vunpack.c.l.b16 %v103
    %v222 = vunpack.c.h.b16 %v103
    %v223 = vunpack.c.l.b16 %v104
    %v224 = vunpack.c.h.b16 %v104
    %v225 = vunpack.c.l.b16 %v105
    %v226 = vunpack.c.l.b16 %v106
    %v227 = vunpack.c.h.b16 %v106
    %v228 = vunpack.c.l.b16 %v107
    %v229 = vunpack.c.h.b16 %v107
    %v230 = vunpack.c.l.b16 %v108
    %v231 = vunpack.c.l.b16 %v109
    %v232 = vunpack.c.h.b16 %v109
    %v233 = vunpack.c.l.b16 %v110
    %v234 = vunpack.c.h.b16 %v110
    %v235 = vunpack.c.l.b16 %v111
    %v236 = vunpack.c.l.b16 %v112
    %v237 = vunpack.c.h.b16 %v112
    %v238 = vunpack.c.l.b16 %v113
    %v239 = vunpack.c.h.b16 %v113
    %v240 = vunpack.c.l.b16 %v114
    %v241 = vunpack.c.l.b16 %v115
    %v242 = vunpack.c.h.b16 %v115
    %v243 = vunpack.c.l.b16 %v116
    %v244 = vunpack.c.h.b16 %v116
    %v245 = vunpack.c.l.b16 %v117
    %v246 = vpack.c.b16 %v171, %v166
    %v247 = vpack.c.b16 %v172, %v167
    %v248 = vpack.c.b16 %v173, %v168
    %v249 = vpack.c.b16 %v174, %v169
    %v250 = vpack.c.b16 %v175, %v170
    %v251 = vpack.c.b16 %v181, %v176
    %v252 = vpack.c.b16 %v182, %v177
    %v253 = vpack.c.b16 %v183, %v178
    %v254 = vpack.c.b16 %v184, %v179
    %v255 = vpack.c.b16 %v185, %v180
    %v256 = vpack.c.b16 %v191, %v186
    %v257 = vpack.c.b16 %v192, %v187
    %v258 = vpack.c.b16 %v193, %v188
    %v259 = vpack.c.b16 %v194, %v189
    %v260 = vpack.c.b16 %v195, %v190
    %v261 = vpack.c.b16 %v201, %v196
    %v262 = vpack.c.b16 %v202, %v197
    %v263 = vpack.c.b16 %v203, %v198
    %v264 = vpack.c.b16 %v204, %v199
    %v265 = vpack.c.b16 %v205, %v200
    %v266 = vpack.c.b16 %v211, %v206
    %v267 = vpack.c.b16 %v212, %v207
    %v268 = vpack.c.b16 %v213, %v208
    %v269 = vpack.c.b16 %v214, %v209
    %v270 = vpack.c.b16 %v215, %v210
    %v271 = vpack.c.b16 %v221, %v216
    %v272 = vpack.c.b16 %v222, %v217
    %v273 = vpack.c.b16 %v223, %v218
    %v274 = vpack.c.b16 %v224, %v219
    %v275 = vpack.c.b16 %v225, %v220
    %v276 = vpack.c.b16 %v231, %v226
    %v277 = vpack.c.b16 %v232, %v227
    %v278 = vpack.c.b16 %v233, %v228
    %v279 = vpack.c.b16 %v234, %v229
    %v280 = vpack.c.b16 %v235, %v230
    %v281 = vpack.c.b16 %v241, %v236
    %v282 = vpack.c.b16 %v242, %v237
    %v283 = vpack.c.b16 %v243, %v238
    %v284 = vpack.c.b16 %v244, %v239
    %v285 = vpack.c.b16 %v245, %v240
    %326 = vmatprep.subr.bf16.mxu0 %v282
    %327 = vmatpush1.bf16.msra.mxu0 %v281
    %328 = vmatprep.subr.bf16.mxu0 %v277
    %329 = vmatpush1.bf16.msra.mxu0 %v276
    %330 = vmatprep.subr.bf16.mxu0 %v272
    %331 = vmatpush1.bf16.msra.mxu0 %v271
    %332 = vmatprep.subr.bf16.mxu0 %v267
    %333 = vmatpush1.bf16.msra.mxu0 %v266
    %334 = vmatprep.subr.bf16.mxu0 %v262
    %335 = vmatpush1.bf16.msra.mxu0 %v261
    %336 = vmatprep.subr.bf16.mxu0 %v257
    %337 = vmatpush1.bf16.msra.mxu0 %v256
    %338 = vmatprep.subr.bf16.mxu0 %v252
    %339 = vmatpush1.bf16.msra.mxu0 %v251
    %340 = vmatprep.subr.bf16.mxu0 %v247
    %341 = vmatpush1.bf16.msra.mxu0 %v246
    %342 = vmatprep.subr.bf16.mxu0 0
    %343 = vmatpush2.bf16.msra.mxu0 0
    %344 = vmatprep.subr.bf16.mxu0 0
    %345 = vmatpush2.bf16.msra.mxu0 0
    %346 = vmatprep.subr.bf16.mxu0 0
    %347 = vmatpush2.bf16.msra.mxu0 0
    %348 = vmatprep.subr.bf16.mxu0 0
    %349 = vmatpush2.bf16.msra.mxu0 0
    %350 = vmatprep.subr.bf16.mxu0 0
    %351 = vmatpush2.bf16.msra.mxu0 0
    %352 = vmatprep.subr.bf16.mxu0 0
    %353 = vmatpush2.bf16.msra.mxu0 0
    %354 = vmatprep.subr.bf16.mxu0 0
    %355 = vmatpush2.bf16.msra.mxu0 0
    %356 = vmatprep.subr.bf16.mxu0 0
    %357 = vmatpush2.bf16.msra.mxu0 0
    %358 = vmatprep.mubr.bf16.mxu0 0
    %359 = vmatmul.mubr.bf16.gmra.mxu0 %v69
    %v360 = vpop.f32.mrf.mxu0
    %v361 = vadd.f32 0.0, %v360
    %v362 = vpop.f32.mrf.mxu0
    %v363 = vadd.f32 0.0, %v362
    %v364 = vpop.f32.mrf.mxu0
    %v365 = vpop.f32.mrf.mxu0
    %366 = vdwg.mxu0
    %367 = vmatprep.subr.bf16.mxu0 %v284
    %368 = vmatpush1.bf16.msra.mxu0 %v283
    %369 = vmatprep.subr.bf16.mxu0 %v279
    %370 = vmatpush1.bf16.msra.mxu0 %v278
    %371 = vmatprep.subr.bf16.mxu0 %v274
    %372 = vmatpush1.bf16.msra.mxu0 %v273
    %373 = vmatprep.subr.bf16.mxu0 %v269
    %374 = vmatpush1.bf16.msra.mxu0 %v268
    %375 = vmatprep.subr.bf16.mxu0 %v264
    %376 = vmatpush1.bf16.msra.mxu0 %v263
    %377 = vmatprep.subr.bf16.mxu0 %v259
    %378 = vmatpush1.bf16.msra.mxu0 %v258
    %379 = vmatprep.subr.bf16.mxu0 %v254
    %380 = vmatpush1.bf16.msra.mxu0 %v253
    %381 = vmatprep.subr.bf16.mxu0 %v249
    %382 = vmatpush1.bf16.msra.mxu0 %v248
    %383 = vmatprep.subr.bf16.mxu0 0
    %384 = vmatpush2.bf16.msra.mxu0 0
    %385 = vmatprep.subr.bf16.mxu0 0
    %386 = vmatpush2.bf16.msra.mxu0 0
    %387 = vmatprep.subr.bf16.mxu0 0
    %388 = vmatpush2.bf16.msra.mxu0 0
    %389 = vmatprep.subr.bf16.mxu0 0
    %390 = vmatpush2.bf16.msra.mxu0 0
    %391 = vmatprep.subr.bf16.mxu0 0
    %392 = vmatpush2.bf16.msra.mxu0 0
    %393 = vmatprep.subr.bf16.mxu0 0
    %394 = vmatpush2.bf16.msra.mxu0 0
    %395 = vmatprep.subr.bf16.mxu0 0
    %396 = vmatpush2.bf16.msra.mxu0 0
    %397 = vmatprep.subr.bf16.mxu0 0
    %398 = vmatpush2.bf16.msra.mxu0 0
    %399 = vmatprep.mubr.bf16.mxu0 0
    %400 = vmatmul.mubr.bf16.gmra.mxu0 %v69
    %v401 = vpop.f32.mrf.mxu0
    %v402 = vadd.f32 0.0, %v401
    %v403 = vpop.f32.mrf.mxu0
    %v404 = vadd.f32 0.0, %v403
    %v405 = vpop.f32.mrf.mxu0
    %v406 = vpop.f32.mrf.mxu0
    %407 = vdwg.mxu0
    %408 = vmatprep.subr.bf16.mxu0 0
    %409 = vmatpush1.bf16.msra.mxu0 %v285
    %410 = vmatprep.subr.bf16.mxu0 0
    %411 = vmatpush1.bf16.msra.mxu0 %v280
    %412 = vmatprep.subr.bf16.mxu0 0
    %413 = vmatpush1.bf16.msra.mxu0 %v275
    %414 = vmatprep.subr.bf16.mxu0 0
    %415 = vmatpush1.bf16.msra.mxu0 %v270
    %416 = vmatprep.subr.bf16.mxu0 0
    %417 = vmatpush1.bf16.msra.mxu0 %v265
    %418 = vmatprep.subr.bf16.mxu0 0
    %419 = vmatpush1.bf16.msra.mxu0 %v260
    %420 = vmatprep.subr.bf16.mxu0 0
    %421 = vmatpush1.bf16.msra.mxu0 %v255
    %422 = vmatprep.subr.bf16.mxu0 0
    %423 = vmatpush1.bf16.msra.mxu0 %v250
    %424 = vmatprep.subr.bf16.mxu0 0
    %425 = vmatpush2.bf16.msra.mxu0 0
    %426 = vmatprep.subr.bf16.mxu0 0
    %427 = vmatpush2.bf16.msra.mxu0 0
    %428 = vmatprep.subr.bf16.mxu0 0
    %429 = vmatpush2.bf16.msra.mxu0 0
    %430 = vmatprep.subr.bf16.mxu0 0
    %431 = vmatpush2.bf16.msra.mxu0 0
    %432 = vmatprep.subr.bf16.mxu0 0
    %433 = vmatpush2.bf16.msra.mxu0 0
    %434 = vmatprep.subr.bf16.mxu0 0
    %435 = vmatpush2.bf16.msra.mxu0 0
    %436 = vmatprep.subr.bf16.mxu0 0
    %437 = vmatpush2.bf16.msra.mxu0 0
    %438 = vmatprep.subr.bf16.mxu0 0
    %439 = vmatpush2.bf16.msra.mxu0 0
    %440 = vmatprep.mubr.bf16.mxu0 0
    %441 = vmatmul.mubr.bf16.gmra.mxu0 %v69
    %v442 = vpop.f32.mrf.mxu0
    %v443 = vadd.f32 0.0, %v442
    %v444 = vpop.f32.mrf.mxu0
    %v445 = vpop.f32.mrf.mxu0
    %v446 = vpop.f32.mrf.mxu0
    %447 = vdwg.mxu0
    %v460 = vunpack.c.l.b16 %v57
    %v461 = vunpack.c.h.b16 %v57
    %v462 = vunpack.c.l.b16 %v58
    %v463 = vunpack.c.h.b16 %v58
    %v464 = vunpack.c.l.b16 %v59
    %v465 = vunpack.c.l.b16 %v60
    %v466 = vunpack.c.h.b16 %v60
    %v467 = vunpack.c.l.b16 %v61
    %v468 = vunpack.c.h.b16 %v61
    %v469 = vunpack.c.l.b16 %v62
    %v470 = vunpack.c.l.b16 %v63
    %v471 = vunpack.c.h.b16 %v63
    %v472 = vunpack.c.l.b16 %v64
    %v473 = vunpack.c.h.b16 %v64
    %v474 = vunpack.c.l.b16 %v65
    %v475 = vunpack.c.l.b16 %v66
    %v476 = vunpack.c.h.b16 %v66
    %v477 = vunpack.c.l.b16 %v67
    %v478 = vunpack.c.h.b16 %v67
    %v479 = vunpack.c.l.b16 %v68
    %v480 = vpack.c.b16 %v465, %v460
    %v481 = vpack.c.b16 %v466, %v461
    %v482 = vpack.c.b16 %v467, %v462
    %v483 = vpack.c.b16 %v468, %v463
    %v484 = vpack.c.b16 %v469, %v464
    %v485 = vpack.c.b16 %v475, %v470
    %v486 = vpack.c.b16 %v476, %v471
    %v487 = vpack.c.b16 %v477, %v472
    %v488 = vpack.c.b16 %v478, %v473
    %v489 = vpack.c.b16 %v479, %v474
    %vm500 = vcmask 261120
    %v502 = vsel %vm500, %v56, 0
    %504 = vmatprep.subr.bf16.mxu0 0
    %505 = vmatpush1.bf16.msra.mxu0 0
    %506 = vmatprep.subr.bf16.mxu0 0
    %507 = vmatpush1.bf16.msra.mxu0 0
    %508 = vmatprep.subr.bf16.mxu0 0
    %509 = vmatpush1.bf16.msra.mxu0 0
    %510 = vmatprep.subr.bf16.mxu0 0
    %511 = vmatpush1.bf16.msra.mxu0 0
    %512 = vmatprep.subr.bf16.mxu0 0
    %513 = vmatpush1.bf16.msra.mxu0 0
    %514 = vmatprep.subr.bf16.mxu0 0
    %515 = vmatpush1.bf16.msra.mxu0 0
    %516 = vmatprep.subr.bf16.mxu0 %v486
    %517 = vmatpush1.bf16.msra.mxu0 %v485
    %518 = vmatprep.subr.bf16.mxu0 %v481
    %519 = vmatpush1.bf16.msra.mxu0 %v480
    %520 = vmatprep.subr.bf16.mxu0 0
    %521 = vmatpush2.bf16.msra.mxu0 0
    %522 = vmatprep.subr.bf16.mxu0 0
    %523 = vmatpush2.bf16.msra.mxu0 0
    %524 = vmatprep.subr.bf16.mxu0 0
    %525 = vmatpush2.bf16.msra.mxu0 0
    %526 = vmatprep.subr.bf16.mxu0 0
    %527 = vmatpush2.bf16.msra.mxu0 0
    %528 = vmatprep.subr.bf16.mxu0 0
    %529 = vmatpush2.bf16.msra.mxu0 0
    %530 = vmatprep.subr.bf16.mxu0 0
    %531 = vmatpush2.bf16.msra.mxu0 0
    %532 = vmatprep.subr.bf16.mxu0 0
    %533 = vmatpush2.bf16.msra.mxu0 0
    %534 = vmatprep.subr.bf16.mxu0 0
    %535 = vmatpush2.bf16.msra.mxu0 0
    %536 = vmatprep.mubr.bf16.mxu0 0
    %537 = vmatmul.mubr.bf16.gmra.mxu0 %v502
    %v538 = vpop.f32.mrf.mxu0
    %v539 = vadd.f32 %v361, %v538
    %v540 = vpop.f32.mrf.mxu0
    %v541 = vadd.f32 %v363, %v540
    %v542 = vpop.f32.mrf.mxu0
    %v543 = vpop.f32.mrf.mxu0
    %544 = vdwg.mxu0
    %545 = vmatprep.subr.bf16.mxu0 0
    %546 = vmatpush1.bf16.msra.mxu0 0
    %547 = vmatprep.subr.bf16.mxu0 0
    %548 = vmatpush1.bf16.msra.mxu0 0
    %549 = vmatprep.subr.bf16.mxu0 0
    %550 = vmatpush1.bf16.msra.mxu0 0
    %551 = vmatprep.subr.bf16.mxu0 0
    %552 = vmatpush1.bf16.msra.mxu0 0
    %553 = vmatprep.subr.bf16.mxu0 0
    %554 = vmatpush1.bf16.msra.mxu0 0
    %555 = vmatprep.subr.bf16.mxu0 0
    %556 = vmatpush1.bf16.msra.mxu0 0
    %557 = vmatprep.subr.bf16.mxu0 %v488
    %558 = vmatpush1.bf16.msra.mxu0 %v487
    %559 = vmatprep.subr.bf16.mxu0 %v483
    %560 = vmatpush1.bf16.msra.mxu0 %v482
    %561 = vmatprep.subr.bf16.mxu0 0
    %562 = vmatpush2.bf16.msra.mxu0 0
    %563 = vmatprep.subr.bf16.mxu0 0
    %564 = vmatpush2.bf16.msra.mxu0 0
    %565 = vmatprep.subr.bf16.mxu0 0
    %566 = vmatpush2.bf16.msra.mxu0 0
    %567 = vmatprep.subr.bf16.mxu0 0
    %568 = vmatpush2.bf16.msra.mxu0 0
    %569 = vmatprep.subr.bf16.mxu0 0
    %570 = vmatpush2.bf16.msra.mxu0 0
    %571 = vmatprep.subr.bf16.mxu0 0
    %572 = vmatpush2.bf16.msra.mxu0 0
    %573 = vmatprep.subr.bf16.mxu0 0
    %574 = vmatpush2.bf16.msra.mxu0 0
    %575 = vmatprep.subr.bf16.mxu0 0
    %576 = vmatpush2.bf16.msra.mxu0 0
    %577 = vmatprep.mubr.bf16.mxu0 0
    %578 = vmatmul.mubr.bf16.gmra.mxu0 %v502
    %v579 = vpop.f32.mrf.mxu0
    %v580 = vadd.f32 %v402, %v579
    %v581 = vpop.f32.mrf.mxu0
    %v582 = vadd.f32 %v404, %v581
    %v583 = vpop.f32.mrf.mxu0
    %v584 = vpop.f32.mrf.mxu0
    %585 = vdwg.mxu0
    %586 = vmatprep.subr.bf16.mxu0 0
    %587 = vmatpush1.bf16.msra.mxu0 0
    %588 = vmatprep.subr.bf16.mxu0 0
    %589 = vmatpush1.bf16.msra.mxu0 0
    %590 = vmatprep.subr.bf16.mxu0 0
    %591 = vmatpush1.bf16.msra.mxu0 0
    %592 = vmatprep.subr.bf16.mxu0 0
    %593 = vmatpush1.bf16.msra.mxu0 0
    %594 = vmatprep.subr.bf16.mxu0 0
    %595 = vmatpush1.bf16.msra.mxu0 0
    %596 = vmatprep.subr.bf16.mxu0 0
    %597 = vmatpush1.bf16.msra.mxu0 0
    %598 = vmatprep.subr.bf16.mxu0 0
    %599 = vmatpush1.bf16.msra.mxu0 %v489
    %600 = vmatprep.subr.bf16.mxu0 0
    %601 = vmatpush1.bf16.msra.mxu0 %v484
    %602 = vmatprep.subr.bf16.mxu0 0
    %603 = vmatpush2.bf16.msra.mxu0 0
    %604 = vmatprep.subr.bf16.mxu0 0
    %605 = vmatpush2.bf16.msra.mxu0 0
    %606 = vmatprep.subr.bf16.mxu0 0
    %607 = vmatpush2.bf16.msra.mxu0 0
    %608 = vmatprep.subr.bf16.mxu0 0
    %609 = vmatpush2.bf16.msra.mxu0 0
    %610 = vmatprep.subr.bf16.mxu0 0
    %611 = vmatpush2.bf16.msra.mxu0 0
    %612 = vmatprep.subr.bf16.mxu0 0
    %613 = vmatpush2.bf16.msra.mxu0 0
    %614 = vmatprep.subr.bf16.mxu0 0
    %615 = vmatpush2.bf16.msra.mxu0 0
    %616 = vmatprep.subr.bf16.mxu0 0
    %617 = vmatpush2.bf16.msra.mxu0 0
    %618 = vmatprep.mubr.bf16.mxu0 0
    %619 = vmatmul.mubr.bf16.gmra.mxu0 %v502
    %v620 = vpop.f32.mrf.mxu0
    %v621 = vadd.f32 %v443, %v620
    %v622 = vpop.f32.mrf.mxu0
    %v623 = vpop.f32.mrf.mxu0
    %v624 = vpop.f32.mrf.mxu0
    %625 = vdwg.mxu0
    %v626 = vld [vmem:[%s5] sm:$0x1f]
    %v628 = vlaneseq
    %v629 = vshrl.u32 %v628, 7
    %v630 = vsub.s32 0, %v629
    %v631 = vrot.slane %v626, %v630
    %v632 = vlaneseq
    %v633 = vshrl.u32 %v632, 7
    %v634 = vsub.s32 1, %v633
    %v635 = vrot.slane %v626, %v634
    %v636 = vlaneseq
    %v637 = vshrl.u32 %v636, 7
    %v638 = vsub.s32 2, %v637
    %v639 = vrot.slane %v626, %v638
    %v640 = vlaneseq
    %v641 = vshrl.u32 %v640, 7
    %v642 = vsub.s32 3, %v641
    %v643 = vrot.slane %v626, %v642
    %v644 = vlaneseq
    %v645 = vshrl.u32 %v644, 7
    %v646 = vsub.s32 4, %v645
    %v647 = vrot.slane %v626, %v646
    %v653 = vadd.f32 %v539, %v631
    %v654 = vadd.f32 %v541, %v635
    %v655 = vadd.f32 %v580, %v639
    %v656 = vadd.f32 %v582, %v643
    %v657 = vadd.f32 %v621, %v647
    %v658 = vld [vmem:[%s2] sm:$0xff]
    %v659 = vxor.u32 %v653, 2147483648
    %v660 = vxor.u32 %v654, 2147483648
    %v661 = vxor.u32 %v655, 2147483648
    %v662 = vmul.f32 %v659, 1.442695
    %v663 = vpow.pop %v662
    %v664 = vmul.f32 %v660, 1.442695
    %v665 = vpow.pop %v664
    %v666 = vmul.f32 %v661, 1.442695
    %v667 = vpow.pop %v666
    %v668 = vadd.f32 %v663, 1.0
    %v669 = vadd.f32 %v665, 1.0
    %v670 = vadd.f32 %v667, 1.0
    %v671 = vrcp.pop %v668
    %v672 = vmul.f32 1.0, %v671
    %v673 = vrcp.pop %v669
    %v674 = vmul.f32 1.0, %v673
    %v675 = vrcp.pop %v670
    %v676 = vmul.f32 1.0, %v675
    %v677 = vmax.f32 %v656, %v657
    %v678 = vmul.f32 %v674, %v658
    %v679 = vmul.f32 %v672, %v677
    %v680 = vadd.f32 %v678, %v679
    %v681 = vtanh.pop %v680
    %v682 = vmul.f32 %v676, %v681
    %683 = vst [vmem:[#allocation7] sm:$0xff] %v682
    %684 = vst [vmem:[#allocation8] sm:$0xff] %v680
    // Predicated region
    $region34: #{fc_model_forward.1} parent=1 // pred_check
      _
    $region35: #{fc_model_forward.1} parent=1 // pred_check_branch
      %686 = sbr.rel (0) target = $region37
    $region36: #{fc_model_forward.1} parent=1 // pred_region
      %s688 = ssub.s32 128, 128
      %689 = vsyncadd [#allocation4], %s688
      %s691 = sshll.u32 [#allocation7], 4
      %s692 = int_to_ptr.vmem [resolvable:$true] %s691
      %694 = dma.vmem_to_hbm [thread:$0]  %s692, 128, %s6, [#allocation4]
    $region37: #{fc_model_forward.1} parent=1 // pred_fallthru
      _
    // Predicated region
    $region38: #{fc_model_forward.1} parent=1 // pred_check
      _
    $region39: #{fc_model_forward.1} parent=1 // pred_check_branch
      %696 = sbr.rel (0) target = $region41
    $region40: #{fc_model_forward.1} parent=1 // pred_region
      %s698 = ssub.s32 128, 128
      %699 = vsyncadd [#allocation9], %s698
      %s701 = sshll.u32 [#allocation8], 4
      %s702 = int_to_ptr.vmem [resolvable:$true] %s701
      %704 = dma.vmem_to_hbm [thread:$0]  %s702, 128, %s7, [#allocation9]
    $region41: #{fc_model_forward.1} parent=1 // pred_fallthru
      _
    // Predicated region
    $region42: #{fc_model_forward.1} parent=1 // pred_check
      _
    $region43: #{fc_model_forward.1} parent=1 // pred_check_branch
      %706 = sbr.rel (0) target = $region45
    $region44: #{fc_model_forward.1} parent=1 // pred_region
      %707 = dma.done [#allocation4], 128
    $region45: #{fc_model_forward.1} parent=1 // pred_fallthru
      _
    // Predicated region
    $region46: #{fc_model_forward.1} parent=1 // pred_check
      _
    $region47: #{fc_model_forward.1} parent=1 // pred_check_branch
      %709 = sbr.rel (0) target = $region49
    $region48: #{fc_model_forward.1} parent=1 // pred_region
      %710 = dma.done [#allocation9], 128
    $region49: #{fc_model_forward.1} parent=1 // pred_fallthru
      _
    %711 = vsyncpa [#allocation3], 1
    %712 = vsyncpa [#allocation6], 1
    %713 = vsyncpa [#allocation4], 1
    %714 = vsyncpa [#allocation9], 1

</llo_original>
